<compile_context>
chip_gen: v5e
topology: v5e:2x2
jax: 0.10.0
libtpu: 0.0.40
codegen_flags: <defaults>
</compile_context>

<pallas_src>
import jax
import jax.numpy as jnp
from jax.experimental import pallas as pl
from jax.experimental.pallas import tpu as pltpu

LEAKY_SLOPE = 0.01   # torch.nn.LeakyReLU default
BN_EPS = 1e-5        # torch.nn.BatchNorm1d default
GEN_WEIGHT = 1.0     # GEN_WEIGHT / AGE_WEIGHT are undefined globals in the source;
AGE_WEIGHT = 1.0     # use synthetic pos_weight = 1.0
LANES = 128          # lane-dense output width
SUBLANE = 8          # f32 sublane granularity


def _leaky_relu(v):
    return jnp.where(v >= 0, v, v * LEAKY_SLOPE)


# --------------------------- fused multi-head kernel --------------------------

def _heads_kernel(x_ref, w1_ref, b1_ref, w2_ref, b2_ref, wo_ref, bo_ref, out_ref):
    """One grid step = one classifier head.  x stays resident in VMEM.

    Per-head math (BN already folded into W/B):
        h  = leaky_relu(x)
        h  = leaky_relu(h @ W1 + B1)
        h  = leaky_relu(h @ W2 + B2)
        y  = sum(h * Wo_row, -1) + Bo          (VPU mul + XLU lane reduce)
    """
    h = _leaky_relu(x_ref[...])                                      # (B, D) f32
    # block_0: linear (bf16 operands, f32 accumulate) -> act
    h = jnp.dot(h.astype(jnp.bfloat16), w1_ref[...],
                preferred_element_type=jnp.float32) + b1_ref[...]    # (B, H)
    h = _leaky_relu(h)
    # block_1: linear -> act
    h = jnp.dot(h.astype(jnp.bfloat16), w2_ref[...],
                preferred_element_type=jnp.float32) + b2_ref[...]    # (B, H)
    h = _leaky_relu(h)
    # out: Linear(out_neurons=1) done on the VPU/XLU (no 1-column MXU push)
    logit = jnp.sum(h * wo_ref[...], axis=-1, keepdims=True) + bo_ref[...]   # (B, 1)
    # lane-dense store: broadcast the logit across 128 lanes; wrapper slices lane 0
    out_ref[...] = jnp.broadcast_to(logit, out_ref.shape)


def run_heads(x, stacked):
    """x: [B, D] f32; stacked: head-stacked folded params -> logits [n_heads, B]."""
    B, D = x.shape
    nh, _, H = stacked["W1"].shape

    # Pad batch up to a sublane multiple of 8 (no-op for the example shapes).
    Bp = ((B + SUBLANE - 1) // SUBLANE) * SUBLANE
    xp = x if Bp == B else jnp.pad(x, ((0, Bp - B), (0, 0)))

    out = pl.pallas_call(
        _heads_kernel,
        grid=(nh,),
        in_specs=[
            # embedding: constant index_map -> DMA'd once, resident across heads
            pl.BlockSpec((Bp, D), lambda h: (0, 0)),
            pl.BlockSpec((None, D, H), lambda h: (h, 0, 0)),   # W1  (bf16)
            pl.BlockSpec((None, 1, H), lambda h: (h, 0, 0)),   # B1  (f32)
            pl.BlockSpec((None, H, H), lambda h: (h, 0, 0)),   # W2  (bf16)
            pl.BlockSpec((None, 1, H), lambda h: (h, 0, 0)),   # B2  (f32)
            pl.BlockSpec((None, 1, H), lambda h: (h, 0, 0)),   # Wo row (f32)
            pl.BlockSpec((None, 1, 1), lambda h: (h, 0, 0)),   # Bo  (f32)
        ],
        out_specs=pl.BlockSpec((None, Bp, LANES), lambda h: (h, 0, 0)),
        out_shape=jax.ShapeDtypeStruct((nh, Bp, LANES), jnp.float32),
        compiler_params=pltpu.CompilerParams(
            dimension_semantics=("parallel",)),   # heads shard across v7x's 2 TCs
    )(xp, stacked["W1"], stacked["B1"], stacked["W2"], stacked["B2"],
      stacked["Wo"], stacked["Bo"])

    return out[:, :B, 0]                                      # (n_heads, B)


# -------- plain-JAX glue: parameters, BN folding / stacking, losses -----------

def _fused_bn(keys, n):
    """Eval-mode BatchNorm1d(running stats) as a per-feature affine scale/shift."""
    gamma = 1.0 + 0.1 * jax.random.normal(keys[0], (1, n), jnp.float32)
    beta = 0.1 * jax.random.normal(keys[1], (1, n), jnp.float32)
    running_mean = 0.1 * jax.random.normal(keys[2], (1, n), jnp.float32)
    running_var = 0.5 + jax.random.uniform(keys[3], (1, n), jnp.float32)
    scale = gamma * jax.lax.rsqrt(running_var + BN_EPS)
    shift = beta - running_mean * scale
    return scale, shift


def _linear(key, fan_in, fan_out):
    kw, kb = jax.random.split(key)
    w = jax.random.normal(kw, (fan_in, fan_out), jnp.float32) / jnp.sqrt(float(fan_in))
    b = 0.01 * jax.random.normal(kb, (1, fan_out), jnp.float32)
    return w, b


def init_classifier_params(key, d_in, n_hidden):
    """Raw (unfolded) params of one SpeechBrain Classifier stack:
    act -> norm -> [Linear -> act -> norm] x 2 -> Linear(1)."""
    ks = jax.random.split(key, 15)
    s0, c0 = _fused_bn(ks[0:4], d_in)
    w1, b1 = _linear(ks[4], d_in, n_hidden)
    s1, c1 = _fused_bn(ks[5:9], n_hidden)
    w2, b2 = _linear(ks[9], n_hidden, n_hidden)
    s2, c2 = _fused_bn(ks[10:14], n_hidden)
    wo, bo = _linear(ks[14], n_hidden, 1)
    return dict(s0=s0, c0=c0, w1=w1, b1=b1, s1=s1, c1=c1,
                w2=w2, b2=b2, s2=s2, c2=c2, wo=wo, bo=bo)


def _fold_head(p):
    """Fold each BN affine into the Linear that immediately follows it.

    (z*s + c) @ w + b  ==  z @ (s.T * w) + (c @ w + b)   -- exact in f32.
    """
    W1 = p["s0"].T * p["w1"]                    # (D, H)
    B1 = p["c0"] @ p["w1"] + p["b1"]            # (1, H)
    W2 = p["s1"].T * p["w2"]                    # (H, H)
    B2 = p["c1"] @ p["w2"] + p["b2"]            # (1, H)
    Wo = p["s2"] * p["wo"].T                    # (1, H)  row of the H->1 weight
    Bo = p["c2"] @ p["wo"] + p["bo"]            # (1, 1)
    return W1, B1, W2, B2, Wo, Bo


def fold_and_stack(param_list):
    """Fold BN into Linears, cast matmul weights to bf16, stack heads on axis 0."""
    folded = [_fold_head(p) for p in param_list]
    return dict(
        W1=jnp.stack([f[0] for f in folded]).astype(jnp.bfloat16),  # (nh, D, H)
        B1=jnp.stack([f[1] for f in folded]),                       # (nh, 1, H) f32
        W2=jnp.stack([f[2] for f in folded]).astype(jnp.bfloat16),  # (nh, H, H)
        B2=jnp.stack([f[3] for f in folded]),                       # (nh, 1, H) f32
        Wo=jnp.stack([f[4] for f in folded]),                       # (nh, 1, H) f32
        Bo=jnp.stack([f[5] for f in folded]),                       # (nh, 1, 1) f32
    )


def bce_with_logits(logits, targets, pos_weight):
    # nn.BCEWithLogitsLoss(pos_weight=p), reduction='mean'
    sp = jax.nn.softplus(-logits)
    loss = (1.0 - targets) * logits + (1.0 + (pos_weight - 1.0) * targets) * sp
    return jnp.mean(loss)


def domain_backprop_forward(emb, stacked_eval, stacked_train,
                            age_true=None, gen_true=None, training=False):
    """Replicates DomainBackprop.forward starting from the encoded embedding.

    emb: [B, 1, D].  Eval: returns y [B].  Training: returns dict (ModelOutput)
    with 'outputs' = y [B] and 'losses' = scalar adapter loss.  The training
    path runs all three heads in ONE fused pallas_call.
    """
    x = emb[:, 0, :]                                         # squeeze time dim
    if training and age_true is not None and gen_true is not None:
        # GradientReverseF forward == identity; coef decay only affects backward.
        # TODO(synk): adapter's training-time Dropout(p=0.3) on emb is not applied.
        logits = run_heads(x, stacked_train)                 # (3, B): main, gender, age
        y, gen, age = logits[0], logits[1], logits[2]
        losses = (bce_with_logits(gen, gen_true.astype(jnp.float32), GEN_WEIGHT)
                  + bce_with_logits(age, age_true.astype(jnp.float32), AGE_WEIGHT))
        return {"outputs": y, "losses": losses}              # ModelOutput
    return run_heads(x, stacked_eval)[0]                     # main classifier only


# ------------------------------- references -----------------------------------

def _exact_ref(x, p):
    """Pure-JAX, unfolded f32 reference of one classifier head (original math)."""
    h = _leaky_relu(x) * p["s0"] + p["c0"]
    h = _leaky_relu(h @ p["w1"] + p["b1"]) * p["s1"] + p["c1"]
    h = _leaky_relu(h @ p["w2"] + p["b2"]) * p["s2"] + p["c2"]
    return (h @ p["wo"] + p["bo"])[:, 0]


def _folded_ref(x, st, head):
    """Pure-JAX reference using the SAME folded/bf16 params as the kernel."""
    h = _leaky_relu(x)
    h = _leaky_relu(jnp.dot(h.astype(jnp.bfloat16), st["W1"][head],
                            preferred_element_type=jnp.float32) + st["B1"][head])
    h = _leaky_relu(jnp.dot(h.astype(jnp.bfloat16), st["W2"][head],
                            preferred_element_type=jnp.float32) + st["B2"][head])
    return jnp.sum(h * st["Wo"][head], axis=-1) + st["Bo"][head][0, 0]


if __name__ == "__main__":
    B, D, H = 8, 128, 128   # small: batch=8, emb dim=128, n_hidden=128, n_layers=2
    key = jax.random.PRNGKey(0)
    k_emb, k_main, k_gen, k_age, k_at, k_gt = jax.random.split(key, 6)

    emb = jax.random.normal(k_emb, (B, 1, D), jnp.float32)
    raw_params = {
        "classifier": init_classifier_params(k_main, D, H),
        "gender": init_classifier_params(k_gen, D, H),
        "age": init_classifier_params(k_age, D, H),
    }
    # Folded + head-stacked params (built once, outside the hot path).
    stacked_eval = fold_and_stack([raw_params["classifier"]])                 # 1 head
    stacked_train = fold_and_stack([raw_params["classifier"],
                                    raw_params["gender"],
                                    raw_params["age"]])                       # 3 heads

    age_true = (jax.random.uniform(k_at, (B,)) > 0.5).astype(jnp.float32)
    gen_true = (jax.random.uniform(k_gt, (B,)) > 0.5).astype(jnp.float32)

    # Eval path: DomainBackprop returns y.
    y_eval = jax.block_until_ready(
        domain_backprop_forward(emb, stacked_eval, stacked_train))

    # Training path (minus dropout/augmentation): ModelOutput(outputs, losses),
    # all three heads in one fused launch.
    out_train = domain_backprop_forward(emb, stacked_eval, stacked_train,
                                        age_true, gen_true, training=True)
    jax.block_until_ready(out_train["losses"])

    # Numerical sanity checks.
    x = emb[:, 0, :]
    assert y_eval.shape == (B,)
    # vs pure-JAX reference using the identical folded/bf16 parameters (tight)
    assert jnp.allclose(y_eval, _folded_ref(x, stacked_eval, 0), atol=5e-3, rtol=5e-3)
    assert jnp.allclose(out_train["outputs"], _folded_ref(x, stacked_train, 0),
                        atol=5e-3, rtol=5e-3)
    gen_logits = run_heads(x, stacked_train)[1]
    assert jnp.allclose(gen_logits, _folded_ref(x, stacked_train, 1),
                        atol=5e-3, rtol=5e-3)
    # vs the original unfolded f32 math (loose: bf16 weight quantization only)
    assert jnp.allclose(y_eval, _exact_ref(x, raw_params["classifier"]),
                        atol=5e-2, rtol=5e-2)
    assert jnp.isfinite(out_train["losses"])

    print("KERNEL_OK")
</pallas_src>

<mosaic_0001>
module attributes {stable_mosaic.version = 11 : i64} {
  func.func @_heads_kernel(%arg0: i32, %arg1: memref<8x128xf32, #tpu.memory_space<vmem>>, %arg2: memref<1x128x128xbf16, #tpu.memory_space<vmem>>, %arg3: memref<1x1x128xf32, #tpu.memory_space<vmem>>, %arg4: memref<1x128x128xbf16, #tpu.memory_space<vmem>>, %arg5: memref<1x1x128xf32, #tpu.memory_space<vmem>>, %arg6: memref<1x1x128xf32, #tpu.memory_space<vmem>>, %arg7: memref<1x1x1xf32, #tpu.memory_space<vmem>>, %arg8: memref<1x8x128xf32, #tpu.memory_space<vmem>>) attributes {dimension_semantics = [#tpu.dimension_semantics<parallel>], iteration_bounds = array<i64: 1>, scalar_prefetch = 0 : i64, scratch_operands = 0 : i64, tpu.core_type = #tpu.core_type<tc>, window_params = [{pipeline_mode = #tpu.pipeline_mode<synchronous>, transform_indices = @transform_0, window_bounds = array<i64: 8, 128>}, {transform_indices = @transform_1, window_bounds = array<i64: 1, 128, 128>}, {transform_indices = @transform_2, window_bounds = array<i64: 1, 1, 128>}, {transform_indices = @transform_3, window_bounds = array<i64: 1, 128, 128>}, {transform_indices = @transform_4, window_bounds = array<i64: 1, 1, 128>}, {transform_indices = @transform_5, window_bounds = array<i64: 1, 1, 128>}, {transform_indices = @transform_6, window_bounds = array<i64: 1, 1, 1>}, {transform_indices = @transform_7, window_bounds = array<i64: 1, 8, 128>}]} {
    %c0 = arith.constant 0 : index
    %c0_0 = arith.constant 0 : index
    %0 = vector.load %arg1[%c0, %c0_0] : memref<8x128xf32, #tpu.memory_space<vmem>>, vector<8x128xf32>
    %cst = arith.constant 0.000000e+00 : f32
    %1 = vector.broadcast %cst : f32 to vector<8x128xf32>
    %2 = arith.cmpf oge, %0, %1 : vector<8x128xf32>
    %cst_1 = arith.constant 0.00999999977 : f32
    %3 = vector.broadcast %cst_1 : f32 to vector<8x128xf32>
    %4 = arith.mulf %0, %3 : vector<8x128xf32>
    %5 = arith.select %2, %0, %4 : vector<8x128xi1>, vector<8x128xf32>
    %6 = arith.truncf %5 : vector<8x128xf32> to vector<8x128xbf16>
    %c0_2 = arith.constant 0 : index
    %c0_3 = arith.constant 0 : index
    %c0_4 = arith.constant 0 : index
    %7 = vector.load %arg2[%c0_2, %c0_3, %c0_4] : memref<1x128x128xbf16, #tpu.memory_space<vmem>>, vector<1x128x128xbf16>
    %8 = vector.shape_cast %7 : vector<1x128x128xbf16> to vector<128x128xbf16>
    %cst_5 = arith.constant dense<0.000000e+00> : vector<8x128xf32>
    %9 = tpu.matmul %6, %8, %cst_5 {dimension_numbers = #tpu.dot_dimension_numbers<[1], [0], [0], [1], [0, 0, 1, 1], [], []>} : vector<8x128xbf16>, vector<128x128xbf16>, vector<8x128xf32> -> vector<8x128xf32>
    %c0_6 = arith.constant 0 : index
    %c0_7 = arith.constant 0 : index
    %c0_8 = arith.constant 0 : index
    %10 = vector.load %arg3[%c0_6, %c0_7, %c0_8] : memref<1x1x128xf32, #tpu.memory_space<vmem>>, vector<1x1x128xf32>
    %11 = vector.shape_cast %10 : vector<1x1x128xf32> to vector<1x128xf32>
    %12 = vector.broadcast %11 : vector<1x128xf32> to vector<8x128xf32>
    %13 = arith.addf %9, %12 : vector<8x128xf32>
    %cst_9 = arith.constant 0.000000e+00 : f32
    %14 = vector.broadcast %cst_9 : f32 to vector<8x128xf32>
    %15 = arith.cmpf oge, %13, %14 : vector<8x128xf32>
    %cst_10 = arith.constant 0.00999999977 : f32
    %16 = vector.broadcast %cst_10 : f32 to vector<8x128xf32>
    %17 = arith.mulf %13, %16 : vector<8x128xf32>
    %18 = arith.select %15, %13, %17 : vector<8x128xi1>, vector<8x128xf32>
    %19 = arith.truncf %18 : vector<8x128xf32> to vector<8x128xbf16>
    %c0_11 = arith.constant 0 : index
    %c0_12 = arith.constant 0 : index
    %c0_13 = arith.constant 0 : index
    %20 = vector.load %arg4[%c0_11, %c0_12, %c0_13] : memref<1x128x128xbf16, #tpu.memory_space<vmem>>, vector<1x128x128xbf16>
    %21 = vector.shape_cast %20 : vector<1x128x128xbf16> to vector<128x128xbf16>
    %cst_14 = arith.constant dense<0.000000e+00> : vector<8x128xf32>
    %22 = tpu.matmul %19, %21, %cst_14 {dimension_numbers = #tpu.dot_dimension_numbers<[1], [0], [0], [1], [0, 0, 1, 1], [], []>} : vector<8x128xbf16>, vector<128x128xbf16>, vector<8x128xf32> -> vector<8x128xf32>
    %c0_15 = arith.constant 0 : index
    %c0_16 = arith.constant 0 : index
    %c0_17 = arith.constant 0 : index
    %23 = vector.load %arg5[%c0_15, %c0_16, %c0_17] : memref<1x1x128xf32, #tpu.memory_space<vmem>>, vector<1x1x128xf32>
    %24 = vector.shape_cast %23 : vector<1x1x128xf32> to vector<1x128xf32>
    %25 = vector.broadcast %24 : vector<1x128xf32> to vector<8x128xf32>
    %26 = arith.addf %22, %25 : vector<8x128xf32>
    %cst_18 = arith.constant 0.000000e+00 : f32
    %27 = vector.broadcast %cst_18 : f32 to vector<8x128xf32>
    %28 = arith.cmpf oge, %26, %27 : vector<8x128xf32>
    %cst_19 = arith.constant 0.00999999977 : f32
    %29 = vector.broadcast %cst_19 : f32 to vector<8x128xf32>
    %30 = arith.mulf %26, %29 : vector<8x128xf32>
    %31 = arith.select %28, %26, %30 : vector<8x128xi1>, vector<8x128xf32>
    %c0_20 = arith.constant 0 : index
    %c0_21 = arith.constant 0 : index
    %c0_22 = arith.constant 0 : index
    %32 = vector.load %arg6[%c0_20, %c0_21, %c0_22] : memref<1x1x128xf32, #tpu.memory_space<vmem>>, vector<1x1x128xf32>
    %33 = vector.shape_cast %32 : vector<1x1x128xf32> to vector<1x128xf32>
    %34 = vector.broadcast %33 : vector<1x128xf32> to vector<8x128xf32>
    %35 = arith.mulf %31, %34 : vector<8x128xf32>
    %cst_23 = arith.constant dense<0.000000e+00> : vector<8xf32>
    %36 = vector.multi_reduction <add>, %35, %cst_23 [1] : vector<8x128xf32> to vector<8xf32>
    %37 = vector.shape_cast %36 : vector<8xf32> to vector<8x1xf32>
    %c0_24 = arith.constant 0 : index
    %c0_25 = arith.constant 0 : index
    %c0_26 = arith.constant 0 : index
    %38 = vector.load %arg7[%c0_24, %c0_25, %c0_26] : memref<1x1x1xf32, #tpu.memory_space<vmem>>, vector<1x1x1xf32>
    %39 = vector.shape_cast %38 : vector<1x1x1xf32> to vector<1x1xf32>
    %40 = vector.broadcast %39 : vector<1x1xf32> to vector<8x1xf32>
    %41 = arith.addf %37, %40 : vector<8x1xf32>
    %42 = vector.shape_cast %41 : vector<8x1xf32> to vector<8x1xf32>
    %43 = vector.broadcast %42 : vector<8x1xf32> to vector<8x128xf32>
    %c0_27 = arith.constant 0 : index
    %c0_28 = arith.constant 0 : index
    %c0_29 = arith.constant 0 : index
    %44 = vector.load %arg8[%c0_27, %c0_28, %c0_29] : memref<1x8x128xf32, #tpu.memory_space<vmem>>, vector<1x8x128xf32>
    %45 = vector.shape_cast %44 : vector<1x8x128xf32> to vector<8x128xf32>
    %46 = vector.shape_cast %43 : vector<8x128xf32> to vector<1x8x128xf32>
    tpu.vector_store %arg8[%c0_27, %c0_28, %c0_29], %46 {strides = array<i32>} : memref<1x8x128xf32, #tpu.memory_space<vmem>>, vector<1x8x128xf32>,
    return
  }
  func.func @transform_0(%arg0: i32) -> (i32, i32) {
    %c0_i32 = arith.constant 0 : i32
    %c0_i32_0 = arith.constant 0 : i32
    %c0_i32_1 = arith.constant 0 : i32
    return %c0_i32, %c0_i32_0 : i32, i32
  }
  func.func @transform_1(%arg0: i32) -> (i32, i32, i32) {
    %c0_i32 = arith.constant 0 : i32
    %c0_i32_0 = arith.constant 0 : i32
    %c0_i32_1 = arith.constant 0 : i32
    return %arg0, %c0_i32, %c0_i32_0 : i32, i32, i32
  }
  func.func @transform_2(%arg0: i32) -> (i32, i32, i32) {
    %c0_i32 = arith.constant 0 : i32
    %c0_i32_0 = arith.constant 0 : i32
    %c0_i32_1 = arith.constant 0 : i32
    return %arg0, %c0_i32, %c0_i32_0 : i32, i32, i32
  }
  func.func @transform_3(%arg0: i32) -> (i32, i32, i32) {
    %c0_i32 = arith.constant 0 : i32
    %c0_i32_0 = arith.constant 0 : i32
    %c0_i32_1 = arith.constant 0 : i32
    return %arg0, %c0_i32, %c0_i32_0 : i32, i32, i32
  }
  func.func @transform_4(%arg0: i32) -> (i32, i32, i32) {
    %c0_i32 = arith.constant 0 : i32
    %c0_i32_0 = arith.constant 0 : i32
    %c0_i32_1 = arith.constant 0 : i32
    return %arg0, %c0_i32, %c0_i32_0 : i32, i32, i32
  }
  func.func @transform_5(%arg0: i32) -> (i32, i32, i32) {
    %c0_i32 = arith.constant 0 : i32
    %c0_i32_0 = arith.constant 0 : i32
    %c0_i32_1 = arith.constant 0 : i32
    return %arg0, %c0_i32, %c0_i32_0 : i32, i32, i32
  }
  func.func @transform_6(%arg0: i32) -> (i32, i32, i32) {
    %c0_i32 = arith.constant 0 : i32
    %c0_i32_0 = arith.constant 0 : i32
    %c0_i32_1 = arith.constant 0 : i32
    return %arg0, %c0_i32, %c0_i32_0 : i32, i32, i32
  }
  func.func @transform_7(%arg0: i32) -> (i32, i32, i32) {
    %c0_i32 = arith.constant 0 : i32
    %c0_i32_0 = arith.constant 0 : i32
    %c0_i32_1 = arith.constant 0 : i32
    return %arg0, %c0_i32, %c0_i32_0 : i32, i32, i32
  }
}

</mosaic_0001>

<llo_original>
// kernel: tpu_custom_call.1
$region0: #{tpu_custom_call.1}
  #allocation0 [shape = 'u32[]', space=smem, size = 0x4, offset = 0x4, fixed_abs, tag = 'smem constant byte address 0x4 - core index']
  #allocation1 [shape = 'u32[72,128]{1,0:T(1,128)}', space=vmem, size = 0x9000, scoped, tag = 'internal scratch']
  #allocation2 [shape = 'f32[1,1,1]{2,1,0:T(1,128)S(1)}', space=vmem, size = 0x200, scoped, tag = 'scoped memory for tpu_custom_call.1']
  %s0 = inlined_call_operand.hbm [shape: f32[8,128], index: 0, kind: input, shape index: {}]
  %s1 = inlined_call_operand.hbm [shape: bf16[1,128,128], index: 1, kind: input, shape index: {}]
  %s2 = inlined_call_operand.vmem [shape: f32[1,1,128], index: 2, kind: input, shape index: {}]
  %s3 = inlined_call_operand.hbm [shape: bf16[1,128,128], index: 3, kind: input, shape index: {}]
  %s4 = inlined_call_operand.vmem [shape: f32[1,1,128], index: 4, kind: input, shape index: {}]
  %s5 = inlined_call_operand.vmem [shape: f32[1,1,128], index: 5, kind: input, shape index: {}]
  %s6 = inlined_call_operand.<no memory space> [shape: f32[1,1,1], index: 6, kind: input, shape index: {}]
  %s7 = inlined_call_operand.hbm [shape: f32[1,8,128], index: 7, kind: output, shape index: {}]
  %s8 = sld [smem:[#allocation0]]
  $region50: #{tpu_custom_call.1} parent=0
    _
  %s10 = ssub.s32 1, %s8
  %s11 = scalar_select 0, %s10, %s8
  %v12 = vstv %s6
  %13 = vst [vmem:[#allocation2] sm:$0x1] %v12
  $region1: #{tpu_custom_call.1} parent=0
    #allocation3 [shape = 'u8[4096]{0}', space=vmem, size = 0x1000, scoped, tag = 'input window, operand 0, single buffered']
    #allocation4 [shape = 's32[1]{0}', space=sflag, size = 0x4, scoped, tag = 'scoped memory for tpu_custom_call.1']
    #allocation5 [shape = 's32[1]{0}', space=sflag, size = 0x4, scoped, tag = 'scoped memory for tpu_custom_call.1']
    #allocation6 [shape = 'u8[32768]{0}', space=vmem, size = 0x8000, scoped, tag = 'input window, operand 1, single buffered']
    #allocation7 [shape = 's32[1]{0}', space=sflag, size = 0x4, scoped, tag = 'scoped memory for tpu_custom_call.1']
    #allocation8 [shape = 'u8[32768]{0}', space=vmem, size = 0x8000, scoped, tag = 'input window, operand 3, single buffered']
    #allocation9 [shape = 'u8[4096]{0}', space=vmem, size = 0x1000, scoped, tag = 'output window, operand 0, single buffered']
    %14 = vsyncpa [#allocation4], 0
    %15 = vsyncpa [#allocation7], 0
    %16 = vsyncpa [#allocation5], 0
    // Predicated region
    $region2: #{tpu_custom_call.1} parent=1 // pred_check
      _
    $region3: #{tpu_custom_call.1} parent=1 // pred_check_branch
      %18 = sbr.rel (0) target = $region5
    $region4: #{tpu_custom_call.1} parent=1 // pred_region
      %20 = vsyncadd [#allocation4], 0
      %s22 = sshll.u32 %s0, 4
      %s23 = int_to_ptr.hbm [resolvable:$true] %s22
      %s24 = sshll.u32 [#allocation3], 4
      %s25 = int_to_ptr.vmem [resolvable:$true] %s24
      %27 = dma.hbm_to_vmem [thread:$0]  %s23, 128, %s25, [#allocation4]
    $region5: #{tpu_custom_call.1} parent=1 // pred_fallthru
      _
    // Predicated region
    $region6: #{tpu_custom_call.1} parent=1 // pred_check
      _
    $region7: #{tpu_custom_call.1} parent=1 // pred_check_branch
      %29 = sbr.rel (0) target = $region9
    $region8: #{tpu_custom_call.1} parent=1 // pred_region
      %31 = vsyncadd [#allocation7], 0
      %s32 = sshll.u32 %s1, 4
      %s33 = int_to_ptr.hbm [resolvable:$true] %s32
      %s34 = sshll.u32 [#allocation6], 4
      %s35 = int_to_ptr.vmem [resolvable:$true] %s34
      %40 = dma.hbm_to_vmem [thread:$0]  %s33, 1024, %s35, [#allocation7], 64, 64, 4
    $region9: #{tpu_custom_call.1} parent=1 // pred_fallthru
      _
    // Predicated region
    $region10: #{tpu_custom_call.1} parent=1 // pred_check
      _
    $region11: #{tpu_custom_call.1} parent=1 // pred_check_branch
      %42 = sbr.rel (0) target = $region13
    $region12: #{tpu_custom_call.1} parent=1 // pred_region
      _
    $region13: #{tpu_custom_call.1} parent=1 // pred_fallthru
      _
    // Predicated region
    $region14: #{tpu_custom_call.1} parent=1 // pred_check
      _
    $region15: #{tpu_custom_call.1} parent=1 // pred_check_branch
      %44 = sbr.rel (0) target = $region17
    $region16: #{tpu_custom_call.1} parent=1 // pred_region
      %46 = vsyncadd [#allocation7], 0
      %s47 = sshll.u32 %s3, 4
      %s48 = int_to_ptr.hbm [resolvable:$true] %s47
      %s49 = sshll.u32 [#allocation8], 4
      %s50 = int_to_ptr.vmem [resolvable:$true] %s49
      %55 = dma.hbm_to_vmem [thread:$0]  %s48, 1024, %s50, [#allocation7], 64, 64, 4
    $region17: #{tpu_custom_call.1} parent=1 // pred_fallthru
      _
    // Predicated region
    $region18: #{tpu_custom_call.1} parent=1 // pred_check
      _
    $region19: #{tpu_custom_call.1} parent=1 // pred_check_branch
      %57 = sbr.rel (0) target = $region21
    $region20: #{tpu_custom_call.1} parent=1 // pred_region
      _
    $region21: #{tpu_custom_call.1} parent=1 // pred_fallthru
      _
    // Predicated region
    $region22: #{tpu_custom_call.1} parent=1 // pred_check
      _
    $region23: #{tpu_custom_call.1} parent=1 // pred_check_branch
      %59 = sbr.rel (0) target = $region25
    $region24: #{tpu_custom_call.1} parent=1 // pred_region
      _
    $region25: #{tpu_custom_call.1} parent=1 // pred_fallthru
      _
    // Predicated region
    $region26: #{tpu_custom_call.1} parent=1 // pred_check
      _
    $region27: #{tpu_custom_call.1} parent=1 // pred_check_branch
      %61 = sbr.rel (0) target = $region29
    $region28: #{tpu_custom_call.1} parent=1 // pred_region
      _
    $region29: #{tpu_custom_call.1} parent=1 // pred_fallthru
      _
    // Predicated region
    $region30: #{tpu_custom_call.1} parent=1 // pred_check
      _
    $region31: #{tpu_custom_call.1} parent=1 // pred_check_branch
      %63 = sbr.rel (0) target = $region33
    $region32: #{tpu_custom_call.1} parent=1 // pred_region
      %65 = dma.done [#allocation4], 128
    $region33: #{tpu_custom_call.1} parent=1 // pred_fallthru
      _
    // Predicated region
    $region34: #{tpu_custom_call.1} parent=1 // pred_check
      _
    $region35: #{tpu_custom_call.1} parent=1 // pred_check_branch
      %67 = sbr.rel (0) target = $region37
    $region36: #{tpu_custom_call.1} parent=1 // pred_region
      %69 = dma.done [#allocation7], 1024
    $region37: #{tpu_custom_call.1} parent=1 // pred_fallthru
      _
    // Predicated region
    $region38: #{tpu_custom_call.1} parent=1 // pred_check
      _
    $region39: #{tpu_custom_call.1} parent=1 // pred_check_branch
      %71 = sbr.rel (0) target = $region41
    $region40: #{tpu_custom_call.1} parent=1 // pred_region
      %73 = dma.done [#allocation7], 1024
    $region41: #{tpu_custom_call.1} parent=1 // pred_fallthru
      _
    %v74 = vld [vmem:[#allocation3] sm:$0xff]
    %vm75 = vcmp.ge.f32.partialorder %v74, 0.0
    %v76 = vmul.f32 %v74, 0.01
    %v77 = vsel %vm75, %v74, %v76
    %v78 = vpack.c.bf16 %v77, %v77
    %v79 = vld [vmem:[#allocation6] sm:$0xf]
    %v80 = vld [vmem:[#allocation6 + $0x4] sm:$0xf]
    %v81 = vld [vmem:[#allocation6 + $0x8] sm:$0xf]
    %v82 = vld [vmem:[#allocation6 + $0xc] sm:$0xf]
    %v83 = vld [vmem:[#allocation6 + $0x10] sm:$0xf]
    %v84 = vld [vmem:[#allocation6 + $0x14] sm:$0xf]
    %v85 = vld [vmem:[#allocation6 + $0x18] sm:$0xf]
    %v86 = vld [vmem:[#allocation6 + $0x1c] sm:$0xf]
    %v87 = vld [vmem:[#allocation6 + $0x20] sm:$0xf]
    %v88 = vld [vmem:[#allocation6 + $0x24] sm:$0xf]
    %v89 = vld [vmem:[#allocation6 + $0x28] sm:$0xf]
    %v90 = vld [vmem:[#allocation6 + $0x2c] sm:$0xf]
    %v91 = vld [vmem:[#allocation6 + $0x30] sm:$0xf]
    %v92 = vld [vmem:[#allocation6 + $0x34] sm:$0xf]
    %v93 = vld [vmem:[#allocation6 + $0x38] sm:$0xf]
    %v94 = vld [vmem:[#allocation6 + $0x3c] sm:$0xf]
    %v95 = vld [vmem:[%s2] sm:$0x1]
    %v97 = vperm.slane %v95, 0
    %v115 = vunpack.c.l.b16 %v79
    %v116 = vunpack.c.l.b16 %v80
    %v117 = vunpack.c.l.b16 %v81
    %v118 = vunpack.c.l.b16 %v82
    %v119 = vunpack.c.l.b16 %v83
    %v120 = vunpack.c.l.b16 %v84
    %v121 = vunpack.c.l.b16 %v85
    %v122 = vunpack.c.l.b16 %v86
    %v123 = vunpack.c.l.b16 %v87
    %v124 = vunpack.c.l.b16 %v88
    %v125 = vunpack.c.l.b16 %v89
    %v126 = vunpack.c.l.b16 %v90
    %v127 = vunpack.c.l.b16 %v91
    %v128 = vunpack.c.l.b16 %v92
    %v129 = vunpack.c.l.b16 %v93
    %v130 = vunpack.c.l.b16 %v94
    %v131 = vpack.c.b16 %v116, %v115
    %v132 = vpack.c.b16 %v118, %v117
    %v133 = vpack.c.b16 %v120, %v119
    %v134 = vpack.c.b16 %v122, %v121
    %v135 = vpack.c.b16 %v124, %v123
    %v136 = vpack.c.b16 %v126, %v125
    %v137 = vpack.c.b16 %v128, %v127
    %v138 = vpack.c.b16 %v130, %v129
    %147 = vmatpush.bf16.msra.mxu0 %v138
    %148 = vmatpush.bf16.msra.mxu0 %v137
    %149 = vmatpush.bf16.msra.mxu0 %v136
    %150 = vmatpush.bf16.msra.mxu0 %v135
    %151 = vmatpush.bf16.msra.mxu0 %v134
    %152 = vmatpush.bf16.msra.mxu0 %v133
    %153 = vmatpush.bf16.msra.mxu0 %v132
    %154 = vmatpush.bf16.msra.mxu0 %v131
    %155 = vmatmul.bf16.gmra.mxu0 %v78
    %v156 = vpop.f32.mrf.mxu0
    %v157 = vadd.f32 %v97, %v156
    %v158 = vpop.f32.mrf.mxu0
    %159 = vdwg.mxu0
    %vm160 = vcmp.ge.f32.partialorder %v157, 0.0
    %v161 = vmul.f32 %v157, 0.01
    %v162 = vsel %vm160, %v157, %v161
    %v163 = vpack.c.bf16 %v162, %v162
    %v164 = vld [vmem:[#allocation8] sm:$0xf]
    %v165 = vld [vmem:[#allocation8 + $0x4] sm:$0xf]
    %v166 = vld [vmem:[#allocation8 + $0x8] sm:$0xf]
    %v167 = vld [vmem:[#allocation8 + $0xc] sm:$0xf]
    %v168 = vld [vmem:[#allocation8 + $0x10] sm:$0xf]
    %v169 = vld [vmem:[#allocation8 + $0x14] sm:$0xf]
    %v170 = vld [vmem:[#allocation8 + $0x18] sm:$0xf]
    %v171 = vld [vmem:[#allocation8 + $0x1c] sm:$0xf]
    %v172 = vld [vmem:[#allocation8 + $0x20] sm:$0xf]
    %v173 = vld [vmem:[#allocation8 + $0x24] sm:$0xf]
    %v174 = vld [vmem:[#allocation8 + $0x28] sm:$0xf]
    %v175 = vld [vmem:[#allocation8 + $0x2c] sm:$0xf]
    %v176 = vld [vmem:[#allocation8 + $0x30] sm:$0xf]
    %v177 = vld [vmem:[#allocation8 + $0x34] sm:$0xf]
    %v178 = vld [vmem:[#allocation8 + $0x38] sm:$0xf]
    %v179 = vld [vmem:[#allocation8 + $0x3c] sm:$0xf]
    %v180 = vld [vmem:[%s4] sm:$0x1]
    %v182 = vperm.slane %v180, 0
    %v200 = vunpack.c.l.b16 %v164
    %v201 = vunpack.c.l.b16 %v165
    %v202 = vunpack.c.l.b16 %v166
    %v203 = vunpack.c.l.b16 %v167
    %v204 = vunpack.c.l.b16 %v168
    %v205 = vunpack.c.l.b16 %v169
    %v206 = vunpack.c.l.b16 %v170
    %v207 = vunpack.c.l.b16 %v171
    %v208 = vunpack.c.l.b16 %v172
    %v209 = vunpack.c.l.b16 %v173
    %v210 = vunpack.c.l.b16 %v174
    %v211 = vunpack.c.l.b16 %v175
    %v212 = vunpack.c.l.b16 %v176
    %v213 = vunpack.c.l.b16 %v177
    %v214 = vunpack.c.l.b16 %v178
    %v215 = vunpack.c.l.b16 %v179
    %v216 = vpack.c.b16 %v201, %v200
    %v217 = vpack.c.b16 %v203, %v202
    %v218 = vpack.c.b16 %v205, %v204
    %v219 = vpack.c.b16 %v207, %v206
    %v220 = vpack.c.b16 %v209, %v208
    %v221 = vpack.c.b16 %v211, %v210
    %v222 = vpack.c.b16 %v213, %v212
    %v223 = vpack.c.b16 %v215, %v214
    %232 = vmatpush.bf16.msra.mxu0 %v223
    %233 = vmatpush.bf16.msra.mxu0 %v222
    %234 = vmatpush.bf16.msra.mxu0 %v221
    %235 = vmatpush.bf16.msra.mxu0 %v220
    %236 = vmatpush.bf16.msra.mxu0 %v219
    %237 = vmatpush.bf16.msra.mxu0 %v218
    %238 = vmatpush.bf16.msra.mxu0 %v217
    %239 = vmatpush.bf16.msra.mxu0 %v216
    %240 = vmatmul.bf16.gmra.mxu0 %v163
    %v241 = vpop.f32.mrf.mxu0
    %v242 = vadd.f32 %v182, %v241
    %v243 = vpop.f32.mrf.mxu0
    %244 = vdwg.mxu0
    %vm245 = vcmp.ge.f32.partialorder %v242, 0.0
    %v246 = vmul.f32 %v242, 0.01
    %v247 = vsel %vm245, %v242, %v246
    %v248 = vld [vmem:[%s5] sm:$0x1]
    %v250 = vperm.slane %v248, 0
    %v252 = vmul.f32 %v247, %v250
    %253 = vadd.xlane.f32.xlu0 %v252
    %v254 = vpop.xlane.xlu0 %253
    %v255 = vld [vmem:[#allocation2] sm:$0x1]
    %v257 = vperm.slane %v255, 0
    %v259 = vadd.f32 %v254, %v257
    %261 = vset.pattern.permute.xlu0 0
    %262 = vperm.xlu0 %261, %v259
    %v263 = vpop.permute.xlu0 %262
    %265 = vst [vmem:[#allocation9] sm:$0xff] %v263
    // Predicated region
    $region42: #{tpu_custom_call.1} parent=1 // pred_check
      _
    $region43: #{tpu_custom_call.1} parent=1 // pred_check_branch
      %267 = sbr.rel (0) target = $region45
    $region44: #{tpu_custom_call.1} parent=1 // pred_region
      %269 = vsyncadd [#allocation5], 0
      %s271 = sshll.u32 [#allocation9], 4
      %s272 = int_to_ptr.vmem [resolvable:$true] %s271
      %s273 = sshll.u32 %s7, 4
      %s274 = int_to_ptr.hbm [resolvable:$true] %s273
      %276 = dma.vmem_to_hbm [thread:$0]  %s272, 128, %s274, [#allocation5]
    $region45: #{tpu_custom_call.1} parent=1 // pred_fallthru
      _
    // Predicated region
    $region46: #{tpu_custom_call.1} parent=1 // pred_check
      _
    $region47: #{tpu_custom_call.1} parent=1 // pred_check_branch
      %278 = sbr.rel (0) target = $region49
    $region48: #{tpu_custom_call.1} parent=1 // pred_region
      %280 = dma.done [#allocation5], 128
    $region49: #{tpu_custom_call.1} parent=1 // pred_fallthru
      _
    %281 = vsyncpa [#allocation4], 1
    %282 = vsyncpa [#allocation7], 1
    %283 = vsyncpa [#allocation5], 1

</llo_original>
